<compile_context>
chip_gen: v7x
topology: tpu7x:2x2x1
jax: 0.10.0
libtpu: 0.0.40
codegen_flags: <defaults>
</compile_context>

<pallas_src>
import functools
import math

import jax
import jax.numpy as jnp
from jax.experimental import pallas as pl
from jax.experimental.pallas import tpu as pltpu


def make_positional_encoding(d_model: int, max_len: int = 5000,
                             dtype=jnp.float32) -> jax.Array:
    """One-time buffer construction (equivalent of PyTorch's register_buffer)."""
    position = jnp.arange(max_len, dtype=jnp.float32)[:, None]              # (max_len, 1)
    div_term = jnp.exp(jnp.arange(0, d_model, 2, dtype=jnp.float32)
                       * (-math.log(10000.0) / d_model))                    # (d_model//2,)
    pe = jnp.zeros((max_len, 1, d_model), jnp.float32)
    pe = pe.at[:, 0, 0::2].set(jnp.sin(position * div_term))
    pe = pe.at[:, 0, 1::2].set(jnp.cos(position * div_term))
    return pe.astype(dtype)                                                 # (max_len, 1, d_model)


# murmur3 fmix32 constants
_GOLDEN = 0x9E3779B1
_MIX1 = 0x85EBCA6B
_MIX2 = 0xC2B2AE35


def _pos_enc_kernel(p_drop, seq_tile, bat_tile, batch, d_model,
                    seed_ref, x_ref, pe_ref, o_ref):
    """One (seq_tile, bat_tile, d_model) block.

    seed_ref: (1,) int32 in SMEM (scalar prefetch)
    x_ref   : (seq_tile, bat_tile, D) input activations
    pe_ref  : (seq_tile, 1, D)        positional-encoding tile (broadcast over batch)
    o_ref   : (seq_tile, bat_tile, D) output
    """
    y = x_ref[...].astype(jnp.float32) + pe_ref[...].astype(jnp.float32)

    if p_drop > 0.0:                                   # static branch (training mode)
        shape = x_ref.shape
        s0 = pl.program_id(0) * seq_tile               # global seq offset of this block
        b0 = pl.program_id(1) * bat_tile               # global batch offset of this block
        seq_i = jax.lax.broadcasted_iota(jnp.int32, shape, 0) + s0
        bat_i = jax.lax.broadcasted_iota(jnp.int32, shape, 1) + b0
        dim_i = jax.lax.broadcasted_iota(jnp.int32, shape, 2)
        lin = (seq_i * batch + bat_i) * d_model + dim_i   # global element index

        # Counter-based PRNG: murmur3 finalizer of (index, seed). VPU-only ops,
        # works on Mosaic and in interpret mode, mask independent of tiling.
        h = lin.astype(jnp.uint32) * jnp.uint32(_GOLDEN)
        h = h + seed_ref[0].astype(jnp.uint32)
        h = h ^ (h >> 16)
        h = h * jnp.uint32(_MIX1)
        h = h ^ (h >> 13)
        h = h * jnp.uint32(_MIX2)
        h = h ^ (h >> 16)
        r = (h & jnp.uint32(0x7FFFFFFF)).astype(jnp.int32)   # 31 uniform bits

        thresh = min(int(p_drop * float(1 << 31)), (1 << 31) - 1)
        keep = r >= jnp.int32(thresh)
        y = jnp.where(keep, y * (1.0 / (1.0 - p_drop)), 0.0)

    o_ref[...] = y.astype(o_ref.dtype)


def _round_up(x: int, m: int) -> int:
    return (x + m - 1) // m * m


def _choose_tiles(S: int, B: int, D: int, itemsize: int,
                  target_bytes: int) -> tuple[int, int]:
    """Pick (seq_tile, batch_tile) so one padded x block is ~target_bytes."""
    # VMEM footprint of one seq row, accounting for (8,128) sublane/lane padding.
    padded_row = _round_up(B, 8) * _round_up(D, 128) * itemsize
    if padded_row <= target_bytes:
        tb = B
        ts = min(S, max(1, target_bytes // padded_row))
    else:
        # Very wide B*D: tile the batch too (tb multiple of 8, or full B).
        ts = 1
        tb = max(8, (target_bytes // (_round_up(D, 128) * itemsize)) // 8 * 8)
        if tb >= B:
            tb = B
    return ts, tb


def positional_encoding_forward(x, pe, *, dropout_p: float = 0.1, seed: int = 0,
                                target_block_bytes: int = 2 * 1024 * 1024):
    """x: (seq_len, batch, d_model); pe: (max_len, 1, d_model)."""
    S, B, D = x.shape
    max_len = pe.shape[0]
    assert S <= max_len and pe.shape[-1] == D

    ts, tb = _choose_tiles(S, B, D, x.dtype.itemsize, target_block_bytes)
    grid = (pl.cdiv(S, ts), pl.cdiv(B, tb))
    seed_arr = jnp.asarray([seed], dtype=jnp.int32)

    kernel = functools.partial(_pos_enc_kernel, float(dropout_p), ts, tb, B, D)

    return pl.pallas_call(
        kernel,
        out_shape=jax.ShapeDtypeStruct((S, B, D), x.dtype),
        grid_spec=pltpu.PrefetchScalarGridSpec(
            num_scalar_prefetch=1,
            grid=grid,
            in_specs=[
                pl.BlockSpec((ts, tb, D), lambda i, j, seed_ref: (i, j, 0)),
                pl.BlockSpec((ts, 1, D), lambda i, j, seed_ref: (i, 0, 0)),
            ],
            out_specs=pl.BlockSpec((ts, tb, D), lambda i, j, seed_ref: (i, j, 0)),
        ),
        compiler_params=pltpu.CompilerParams(
            dimension_semantics=("parallel", "parallel"),
            # Live VMEM ~ 2*(x_blk + pe_blk + out_blk) ~ 4.2 * 2 MiB << 32 MiB,
            # which is safe on v5e/v6e/v7x scoped-VMEM budgets.
            vmem_limit_bytes=32 * 1024 * 1024),
    )(seed_arr, x, pe)


if __name__ == "__main__":
    d_model, max_len = 128, 512
    seq_len, batch = 16, 4

    key = jax.random.PRNGKey(0)
    x = jax.random.normal(key, (seq_len, batch, d_model), jnp.float32)

    # One-time buffer build (register_buffer analog) -- NOT in the per-step path.
    pe = make_positional_encoding(d_model, max_len, dtype=x.dtype)

    # --- eval / p=0 path: must match x + pe[:seq_len] exactly -----------------
    out_eval = positional_encoding_forward(x, pe, dropout_p=0.0)
    jax.block_until_ready(out_eval)
    ref = x + pe[:seq_len]
    assert out_eval.shape == (seq_len, batch, d_model)
    assert jnp.allclose(out_eval, ref, atol=1e-6, rtol=1e-6)

    # --- training path with dropout p=0.1 -------------------------------------
    p = 0.1
    out_drop = positional_encoding_forward(x, pe, dropout_p=p, seed=123)
    jax.block_until_ready(out_drop)
    scaled = ref * (1.0 / (1.0 - p))
    is_dropped = out_drop == 0.0
    # Every element is either zeroed or equal to (x + pe) / (1 - p).
    assert bool(jnp.all(is_dropped | jnp.isclose(out_drop, scaled, atol=1e-5, rtol=1e-5)))
    drop_frac = float(jnp.mean(is_dropped.astype(jnp.float32)))
    assert 0.02 <= drop_frac <= 0.25, drop_frac   # loose statistical check (8192 samples)

    print("KERNEL_OK")
</pallas_src>

<mosaic_0001>
module attributes {stable_mosaic.version = 11 : i64} {
  func.func @_pos_enc_kernel(%arg0: i32, %arg1: i32, %arg2: memref<1xi32, #tpu.memory_space<smem>>, %arg3: memref<16x4x128xf32, #tpu.memory_space<vmem>>, %arg4: memref<16x1x128xf32, #tpu.memory_space<vmem>>, %arg5: memref<16x4x128xf32, #tpu.memory_space<vmem>>) attributes {dimension_semantics = [#tpu.dimension_semantics<parallel>, #tpu.dimension_semantics<parallel>], iteration_bounds = array<i64: 1, 1>, scalar_prefetch = 1 : i64, scratch_operands = 0 : i64, tpu.core_type = #tpu.core_type<tc>, window_params = [{transform_indices = @transform_0, window_bounds = array<i64: 16, 4, 128>}, {transform_indices = @transform_1, window_bounds = array<i64: 16, 1, 128>}, {transform_indices = @transform_2, window_bounds = array<i64: 16, 4, 128>}]} {
    %c0 = arith.constant 0 : index
    %c0_0 = arith.constant 0 : index
    %c0_1 = arith.constant 0 : index
    %0 = vector.load %arg3[%c0, %c0_0, %c0_1] : memref<16x4x128xf32, #tpu.memory_space<vmem>>, vector<16x4x128xf32>
    %c0_2 = arith.constant 0 : index
    %c0_3 = arith.constant 0 : index
    %c0_4 = arith.constant 0 : index
    %1 = vector.load %arg4[%c0_2, %c0_3, %c0_4] : memref<16x1x128xf32, #tpu.memory_space<vmem>>, vector<16x1x128xf32>
    %2 = vector.broadcast %1 : vector<16x1x128xf32> to vector<16x4x128xf32>
    %3 = arith.addf %0, %2 : vector<16x4x128xf32>
    %c0_5 = arith.constant 0 : index
    %c0_6 = arith.constant 0 : index
    %c0_7 = arith.constant 0 : index
    %4 = vector.load %arg5[%c0_5, %c0_6, %c0_7] : memref<16x4x128xf32, #tpu.memory_space<vmem>>, vector<16x4x128xf32>
    tpu.vector_store %arg5[%c0_5, %c0_6, %c0_7], %3 {strides = array<i32>} : memref<16x4x128xf32, #tpu.memory_space<vmem>>, vector<16x4x128xf32>,
    return
  }
  func.func @transform_0(%arg0: i32, %arg1: i32, %arg2: memref<1xi32, #tpu.memory_space<smem>>) -> (i32, i32, i32) {
    %c0_i32 = arith.constant 0 : i32
    %c0_i32_0 = arith.constant 0 : i32
    return %arg0, %arg1, %c0_i32 : i32, i32, i32
  }
  func.func @transform_1(%arg0: i32, %arg1: i32, %arg2: memref<1xi32, #tpu.memory_space<smem>>) -> (i32, i32, i32) {
    %c0_i32 = arith.constant 0 : i32
    %c0_i32_0 = arith.constant 0 : i32
    %c0_i32_1 = arith.constant 0 : i32
    return %arg0, %c0_i32, %c0_i32_0 : i32, i32, i32
  }
  func.func @transform_2(%arg0: i32, %arg1: i32, %arg2: memref<1xi32, #tpu.memory_space<smem>>) -> (i32, i32, i32) {
    %c0_i32 = arith.constant 0 : i32
    %c0_i32_0 = arith.constant 0 : i32
    return %arg0, %arg1, %c0_i32 : i32, i32, i32
  }
}

</mosaic_0001>

<llo_original>
// kernel: tpu_custom_call.1
$region0: #{tpu_custom_call.1}
  #allocation0 [shape = 'u32[]', space=smem, size = 0x4, offset = 0x4, fixed_abs, tag = 'smem constant byte address 0x4 - core index']
  #allocation1 [shape = 'u32[144,128]{1,0:T(1,128)}', space=vmem, size = 0x12000, scoped, tag = 'internal scratch']
  #allocation2 [shape = 's32[1]{0}', space=sflag, size = 0x4, scoped, tag = 'scoped memory for tpu_custom_call.1']
  #allocation3 [shape = 's32[1]{0:T(128)S(6)}', space=smem, size = 0x200, scoped, tag = 'prefetched SMEM operand 0']
  %s0 = inlined_call_operand.<no memory space> [shape: s32[1], index: 0, kind: input, shape index: {}]
  %s1 = inlined_call_operand.hbm [shape: f32[16,4,128], index: 1, kind: input, shape index: {}]
  %s2 = inlined_call_operand.hbm [shape: f32[512,1,128], index: 2, kind: input, shape index: {}]
  %s3 = inlined_call_operand.hbm [shape: f32[16,4,128], index: 3, kind: output, shape index: {}]
  %s4 = sld [smem:[#allocation0]]
  $region26: #{tpu_custom_call.1} parent=0
    _
  %s6 = ssub.s32 1, %s4
  %s7 = scalar_select 0, %s6, %s4
  %8 = sst [smem:[#allocation3]] %s0
  $region1: #{tpu_custom_call.1} parent=0
    #allocation4 [shape = 'u8[32768]{0}', space=vmem, size = 0x8000, scoped, tag = 'input window, operand 1, single buffered']
    #allocation5 [shape = 's32[1]{0}', space=sflag, size = 0x4, scoped, tag = 'scoped memory for tpu_custom_call.1']
    #allocation6 [shape = 's32[1]{0}', space=sflag, size = 0x4, scoped, tag = 'scoped memory for tpu_custom_call.1']
    #allocation7 [shape = 'u8[8192]{0}', space=vmem, size = 0x2000, scoped, tag = 'input window, operand 2, single buffered']
    #allocation8 [shape = 's32[1]{0}', space=sflag, size = 0x4, scoped, tag = 'scoped memory for tpu_custom_call.1']
    #allocation9 [shape = 'u8[32768]{0}', space=vmem, size = 0x8000, scoped, tag = 'output window, operand 0, single buffered']
    %9 = vsyncpa [#allocation5], 0
    %10 = vsyncpa [#allocation8], 0
    %11 = vsyncpa [#allocation6], 0
    // Predicated region
    $region2: #{tpu_custom_call.1} parent=1 // pred_check
      _
    $region3: #{tpu_custom_call.1} parent=1 // pred_check_branch
      %13 = sbr.rel (0) target = $region5
    $region4: #{tpu_custom_call.1} parent=1 // pred_region
      %s15 = ssub.s32 1024, 1024
      %16 = vsyncadd [#allocation5], %s15
      %s17 = sshll.u32 [#allocation4], 4
      %s18 = int_to_ptr.vmem [resolvable:$true] %s17
      %23 = dma.hbm_to_vmem [thread:$0]  %s1, 1024, %s18, [#allocation5], 64, 64, 4
    $region5: #{tpu_custom_call.1} parent=1 // pred_fallthru
      _
    // Predicated region
    $region6: #{tpu_custom_call.1} parent=1 // pred_check
      _
    $region7: #{tpu_custom_call.1} parent=1 // pred_check_branch
      %25 = sbr.rel (0) target = $region9
    $region8: #{tpu_custom_call.1} parent=1 // pred_region
      %s27 = ssub.s32 256, 256
      %28 = vsyncadd [#allocation8], %s27
      %s29 = sshll.u32 [#allocation7], 4
      %s30 = int_to_ptr.vmem [resolvable:$true] %s29
      %35 = dma.hbm_to_vmem [thread:$0]  %s2, 256, %s30, [#allocation8], 16, 16, 1
    $region9: #{tpu_custom_call.1} parent=1 // pred_fallthru
      _
    // Predicated region
    $region10: #{tpu_custom_call.1} parent=1 // pred_check
      _
    $region11: #{tpu_custom_call.1} parent=1 // pred_check_branch
      %37 = sbr.rel (0) target = $region13
    $region12: #{tpu_custom_call.1} parent=1 // pred_region
      %38 = dma.done [#allocation5], 1024
    $region13: #{tpu_custom_call.1} parent=1 // pred_fallthru
      _
    // Predicated region
    $region14: #{tpu_custom_call.1} parent=1 // pred_check
      _
    $region15: #{tpu_custom_call.1} parent=1 // pred_check_branch
      %40 = sbr.rel (0) target = $region17
    $region16: #{tpu_custom_call.1} parent=1 // pred_region
      %41 = dma.done [#allocation8], 256
    $region17: #{tpu_custom_call.1} parent=1 // pred_fallthru
      _
    %v42 = vld [vmem:[#allocation4] sm:$0xf]
    %v43 = vld [vmem:[#allocation4 + $0x4] sm:$0xf]
    %v44 = vld [vmem:[#allocation4 + $0x8] sm:$0xf]
    %v45 = vld [vmem:[#allocation4 + $0xc] sm:$0xf]
    %v46 = vld [vmem:[#allocation4 + $0x10] sm:$0xf]
    %v47 = vld [vmem:[#allocation4 + $0x14] sm:$0xf]
    %v48 = vld [vmem:[#allocation4 + $0x18] sm:$0xf]
    %v49 = vld [vmem:[#allocation4 + $0x1c] sm:$0xf]
    %v50 = vld [vmem:[#allocation4 + $0x20] sm:$0xf]
    %v51 = vld [vmem:[#allocation4 + $0x24] sm:$0xf]
    %v52 = vld [vmem:[#allocation4 + $0x28] sm:$0xf]
    %v53 = vld [vmem:[#allocation4 + $0x2c] sm:$0xf]
    %v54 = vld [vmem:[#allocation4 + $0x30] sm:$0xf]
    %v55 = vld [vmem:[#allocation4 + $0x34] sm:$0xf]
    %v56 = vld [vmem:[#allocation4 + $0x38] sm:$0xf]
    %v57 = vld [vmem:[#allocation4 + $0x3c] sm:$0xf]
    %v58 = vld [vmem:[#allocation7] sm:$0x1]
    %v59 = vld [vmem:[#allocation7 + $0x1] sm:$0x1]
    %v60 = vld [vmem:[#allocation7 + $0x2] sm:$0x1]
    %v61 = vld [vmem:[#allocation7 + $0x3] sm:$0x1]
    %v62 = vld [vmem:[#allocation7 + $0x4] sm:$0x1]
    %v63 = vld [vmem:[#allocation7 + $0x5] sm:$0x1]
    %v64 = vld [vmem:[#allocation7 + $0x6] sm:$0x1]
    %v65 = vld [vmem:[#allocation7 + $0x7] sm:$0x1]
    %v66 = vld [vmem:[#allocation7 + $0x8] sm:$0x1]
    %v67 = vld [vmem:[#allocation7 + $0x9] sm:$0x1]
    %v68 = vld [vmem:[#allocation7 + $0xa] sm:$0x1]
    %v69 = vld [vmem:[#allocation7 + $0xb] sm:$0x1]
    %v70 = vld [vmem:[#allocation7 + $0xc] sm:$0x1]
    %v71 = vld [vmem:[#allocation7 + $0xd] sm:$0x1]
    %v72 = vld [vmem:[#allocation7 + $0xe] sm:$0x1]
    %v73 = vld [vmem:[#allocation7 + $0xf] sm:$0x1]
    %v90 = vlaneseq
    %v91 = vshrl.u32 %v90, 7
    %v92 = vsub.s32 0, %v91
    %v93 = vrot.slane %v58, %v92
    %v94 = vlaneseq
    %v95 = vshrl.u32 %v94, 7
    %v96 = vsub.s32 0, %v95
    %v97 = vrot.slane %v59, %v96
    %v98 = vlaneseq
    %v99 = vshrl.u32 %v98, 7
    %v100 = vsub.s32 0, %v99
    %v101 = vrot.slane %v60, %v100
    %v102 = vlaneseq
    %v103 = vshrl.u32 %v102, 7
    %v104 = vsub.s32 0, %v103
    %v105 = vrot.slane %v61, %v104
    %v106 = vlaneseq
    %v107 = vshrl.u32 %v106, 7
    %v108 = vsub.s32 0, %v107
    %v109 = vrot.slane %v62, %v108
    %v110 = vlaneseq
    %v111 = vshrl.u32 %v110, 7
    %v112 = vsub.s32 0, %v111
    %v113 = vrot.slane %v63, %v112
    %v114 = vlaneseq
    %v115 = vshrl.u32 %v114, 7
    %v116 = vsub.s32 0, %v115
    %v117 = vrot.slane %v64, %v116
    %v118 = vlaneseq
    %v119 = vshrl.u32 %v118, 7
    %v120 = vsub.s32 0, %v119
    %v121 = vrot.slane %v65, %v120
    %v122 = vlaneseq
    %v123 = vshrl.u32 %v122, 7
    %v124 = vsub.s32 0, %v123
    %v125 = vrot.slane %v66, %v124
    %v126 = vlaneseq
    %v127 = vshrl.u32 %v126, 7
    %v128 = vsub.s32 0, %v127
    %v129 = vrot.slane %v67, %v128
    %v130 = vlaneseq
    %v131 = vshrl.u32 %v130, 7
    %v132 = vsub.s32 0, %v131
    %v133 = vrot.slane %v68, %v132
    %v134 = vlaneseq
    %v135 = vshrl.u32 %v134, 7
    %v136 = vsub.s32 0, %v135
    %v137 = vrot.slane %v69, %v136
    %v138 = vlaneseq
    %v139 = vshrl.u32 %v138, 7
    %v140 = vsub.s32 0, %v139
    %v141 = vrot.slane %v70, %v140
    %v142 = vlaneseq
    %v143 = vshrl.u32 %v142, 7
    %v144 = vsub.s32 0, %v143
    %v145 = vrot.slane %v71, %v144
    %v146 = vlaneseq
    %v147 = vshrl.u32 %v146, 7
    %v148 = vsub.s32 0, %v147
    %v149 = vrot.slane %v72, %v148
    %v150 = vlaneseq
    %v151 = vshrl.u32 %v150, 7
    %v152 = vsub.s32 0, %v151
    %v153 = vrot.slane %v73, %v152
    %v170 = vadd.f32 %v42, %v93
    %v171 = vadd.f32 %v43, %v97
    %v172 = vadd.f32 %v44, %v101
    %v173 = vadd.f32 %v45, %v105
    %v174 = vadd.f32 %v46, %v109
    %v175 = vadd.f32 %v47, %v113
    %v176 = vadd.f32 %v48, %v117
    %v177 = vadd.f32 %v49, %v121
    %v178 = vadd.f32 %v50, %v125
    %v179 = vadd.f32 %v51, %v129
    %v180 = vadd.f32 %v52, %v133
    %v181 = vadd.f32 %v53, %v137
    %v182 = vadd.f32 %v54, %v141
    %v183 = vadd.f32 %v55, %v145
    %v184 = vadd.f32 %v56, %v149
    %v185 = vadd.f32 %v57, %v153
    %186 = vst [vmem:[#allocation9] sm:$0xf] %v170
    %187 = vst [vmem:[#allocation9 + $0x4] sm:$0xf] %v171
    %188 = vst [vmem:[#allocation9 + $0x8] sm:$0xf] %v172
    %189 = vst [vmem:[#allocation9 + $0xc] sm:$0xf] %v173
    %190 = vst [vmem:[#allocation9 + $0x10] sm:$0xf] %v174
    %191 = vst [vmem:[#allocation9 + $0x14] sm:$0xf] %v175
    %192 = vst [vmem:[#allocation9 + $0x18] sm:$0xf] %v176
    %193 = vst [vmem:[#allocation9 + $0x1c] sm:$0xf] %v177
    %194 = vst [vmem:[#allocation9 + $0x20] sm:$0xf] %v178
    %195 = vst [vmem:[#allocation9 + $0x24] sm:$0xf] %v179
    %196 = vst [vmem:[#allocation9 + $0x28] sm:$0xf] %v180
    %197 = vst [vmem:[#allocation9 + $0x2c] sm:$0xf] %v181
    %198 = vst [vmem:[#allocation9 + $0x30] sm:$0xf] %v182
    %199 = vst [vmem:[#allocation9 + $0x34] sm:$0xf] %v183
    %200 = vst [vmem:[#allocation9 + $0x38] sm:$0xf] %v184
    %201 = vst [vmem:[#allocation9 + $0x3c] sm:$0xf] %v185
    // Predicated region
    $region18: #{tpu_custom_call.1} parent=1 // pred_check
      _
    $region19: #{tpu_custom_call.1} parent=1 // pred_check_branch
      %203 = sbr.rel (0) target = $region21
    $region20: #{tpu_custom_call.1} parent=1 // pred_region
      %s205 = ssub.s32 1024, 1024
      %206 = vsyncadd [#allocation6], %s205
      %s207 = sshll.u32 [#allocation9], 4
      %s208 = int_to_ptr.vmem [resolvable:$true] %s207
      %213 = dma.vmem_to_hbm [thread:$0]  %s208, 1024, %s3, [#allocation6], 64, 64, 4
    $region21: #{tpu_custom_call.1} parent=1 // pred_fallthru
      _
    // Predicated region
    $region22: #{tpu_custom_call.1} parent=1 // pred_check
      _
    $region23: #{tpu_custom_call.1} parent=1 // pred_check_branch
      %215 = sbr.rel (0) target = $region25
    $region24: #{tpu_custom_call.1} parent=1 // pred_region
      %216 = dma.done [#allocation6], 1024
    $region25: #{tpu_custom_call.1} parent=1 // pred_fallthru
      _
    %217 = vsyncpa [#allocation5], 1
    %218 = vsyncpa [#allocation8], 1
    %219 = vsyncpa [#allocation6], 1

</llo_original>
